<compile_context>
chip_gen: v7x
topology: tpu7x:2x2x1
jax: 0.10.0
libtpu: 0.0.40
codegen_flags: <defaults>
</compile_context>

<pallas_src>
import functools
import math

import jax
import jax.numpy as jnp
from jax.experimental import pallas as pl
from jax.experimental.pallas import tpu as pltpu

_LANES = 128
_CHUNK_ROWS = 256            # inner-loop chunk rows (multiple of 8/16/32)
_TWO_LOG_PI = 2.0 * math.log(math.pi)


def _gaussian_bc_tile_kernel(action_ref, mean_ref, std_ref, out_ref, *,
                             valid_rows, chunk_rows, needs_mask):
    """Partial sums of the (pre -0.5) NLL term for one (TB, C) tile.

    The tile is processed in `chunk_rows`-row chunks inside a fori_loop,
    accumulating into a single (8, C) f32 slab, so the elementwise term never
    materializes tile-wide in VMEM.  Rows at/after `valid_rows` (undefined
    data in the boundary block) are masked to zero; the mask is emitted only
    on the last grid step and only when the grid actually overruns.
    """
    tb, c = action_ref.shape
    nchunks = tb // chunk_rows
    tile_row0 = pl.program_id(0) * tb

    def tile_partial(apply_mask):
        def body(ci, acc):
            r0 = pl.multiple_of(ci * chunk_rows, chunk_rows)
            a = action_ref[pl.ds(r0, chunk_rows), :].astype(jnp.float32)
            m = mean_ref[pl.ds(r0, chunk_rows), :].astype(jnp.float32)
            s = std_ref[pl.ds(r0, chunk_rows), :].astype(jnp.float32)
            diff = a - m
            var = s * s
            # (a-m)^2/var + 2*log(std) + 2*log(pi) = diff^2/var + log(var) + 2*log(pi)
            term = diff * diff / var + jnp.log(var) + jnp.float32(_TWO_LOG_PI)
            if apply_mask:
                rows = (jax.lax.broadcasted_iota(jnp.int32, (chunk_rows, c), 0)
                        + (tile_row0 + r0))
                term = jnp.where(rows < valid_rows, term, 0.0)
            # Fold (chunk, C) -> (8, C): pure VPU adds, no cross-lane reduce.
            return acc + term.reshape(chunk_rows // 8, 8, c).sum(axis=0)

        return jax.lax.fori_loop(0, nchunks, body,
                                 jnp.zeros((8, c), jnp.float32))

    if needs_mask:
        is_last = pl.program_id(0) == pl.num_programs(0) - 1

        @pl.when(is_last)
        def _():
            out_ref[0] = tile_partial(True)

        @pl.when(jnp.logical_not(is_last))
        def _():
            out_ref[0] = tile_partial(False)
    else:
        out_ref[0] = tile_partial(False)


def _gaussian_bc_loss_jnp(action, mean, std):
    """Fused XLA fallback for tiny / degenerate shapes."""
    a = action.astype(jnp.float32)
    m = mean.astype(jnp.float32)
    s = std.astype(jnp.float32)
    var = s * s
    term = (a - m) * (a - m) / var + jnp.log(var) + jnp.float32(_TWO_LOG_PI)
    return 0.5 * jnp.sum(term) / jnp.float32(action.shape[0])


def gaussian_bc_loss(x, action, mean, std, *,
                     pipeline_budget_bytes=24 * 1024 * 1024,
                     min_kernel_elements=65536):
    """Pallas implementation of GaussianBCLoss.forward(x, action, mean, std)."""
    del x  # unused, as in the PyTorch module
    B, A = action.shape
    n = B * A

    itemsizes = [v.dtype.itemsize for v in (action, mean, std)]
    # Sublane alignment: 8 rows for 32-bit, 16 for 16-bit, 32 for 8-bit dtypes.
    row_align = max(8 * max(1, 4 // it) for it in itemsizes)

    # Tiny inputs: launch/fixed overhead dominates -> plain fused XLA.
    if n < min_kernel_elements:
        return _gaussian_bc_loss_jnp(action, mean, std)

    # Pick a zero-copy view of the data.
    if n % _LANES == 0:
        # Lane-dense view: contiguous reshape is a free bitcast (no HBM copy).
        rows, cols = n // _LANES, _LANES
        arrs = [v.reshape(rows, cols) for v in (action, mean, std)]
    else:
        # Ragged element count: feed the original (B, A) layout directly
        # (block last dim equals the full array dim -> still zero copies).
        rows, cols = B, A
        arrs = [action, mean, std]

    if rows < row_align:
        return _gaussian_bc_loss_jnp(action, mean, std)

    # Tile sizing against the lane-padded VMEM footprint of all three
    # double-buffered inputs (~24 MiB pipeline state: safe on v5e/v6e/v7x).
    cols_padded = -(-cols // _LANES) * _LANES
    bytes_per_row = 2 * cols_padded * sum(itemsizes)     # x2: double-buffered
    rows_cap = -(-rows // row_align) * row_align
    tb = min(max(pipeline_budget_bytes // bytes_per_row, row_align), rows_cap)
    if tb >= _CHUNK_ROWS:
        tb = (tb // _CHUNK_ROWS) * _CHUNK_ROWS
        chunk_rows = _CHUNK_ROWS
    else:
        tb = max(row_align, (tb // row_align) * row_align)
        chunk_rows = tb
    num_tiles = -(-rows // tb)
    needs_mask = (num_tiles * tb) != rows   # boundary block has undefined rows

    kernel = functools.partial(
        _gaussian_bc_tile_kernel,
        valid_rows=rows, chunk_rows=chunk_rows, needs_mask=needs_mask)

    partials = pl.pallas_call(
        kernel,
        out_shape=jax.ShapeDtypeStruct((num_tiles, 8, cols), jnp.float32),
        grid_spec=pltpu.PrefetchScalarGridSpec(
            num_scalar_prefetch=0,
            grid=(num_tiles,),
            in_specs=[pl.BlockSpec((tb, cols), lambda i: (i, 0))] * 3,
            out_specs=pl.BlockSpec((1, 8, cols), lambda i: (i, 0, 0)),
        ),
        compiler_params=pltpu.CompilerParams(
            dimension_semantics=("parallel",),   # independent tiles -> megacore OK
            vmem_limit_bytes=32 * 1024 * 1024,   # load-bearing on v5e; safe v6e/v7x
        ),
    )(*arrs)

    # loss = -mean_b( sum_a( -0.5 * term ) ) = 0.5 / B * sum_{b,a} term
    return 0.5 * jnp.sum(partials) / jnp.float32(B)


def _reference(action, mean, std):
    a = action.astype(jnp.float32)
    m = mean.astype(jnp.float32)
    s = std.astype(jnp.float32)
    log_pi = jnp.log(jnp.float32(math.pi))
    ll = -0.5 * ((a - m) ** 2 / (s * s) + 2.0 * jnp.log(s) + 2.0 * log_pi)
    return -jnp.mean(jnp.sum(ll, axis=1))


def _check(shape, dtype=jnp.float32, seed=0, force_kernel=False, rtol=1e-5):
    kk = jax.random.split(jax.random.PRNGKey(seed), 3)
    Bc, Ac = shape
    ac = jax.random.normal(kk[0], (Bc, Ac), dtype=dtype)
    mu = jax.random.normal(kk[1], (Bc, Ac), dtype=dtype)
    sd = jax.random.uniform(kk[2], (Bc, Ac), minval=0.5, maxval=1.5, dtype=dtype)
    kwargs = {"min_kernel_elements": 0} if force_kernel else {}
    got = jax.block_until_ready(gaussian_bc_loss(None, ac, mu, sd, **kwargs))
    want = _reference(ac, mu, sd)
    assert jnp.allclose(got, want, rtol=rtol, atol=1e-5), (shape, dtype, got, want)


if __name__ == "__main__":
    # Primary example at a small shape consistent with the module (a batch of
    # action vectors); force the Pallas kernel path so it definitely runs.
    key = jax.random.PRNGKey(0)
    k1, k2, k3, k4 = jax.random.split(key, 4)
    B, A = 64, 32
    x = jax.random.normal(k1, (B, A), dtype=jnp.float32)       # unused by forward
    action = jax.random.normal(k2, (B, A), dtype=jnp.float32)
    mean = jax.random.normal(k3, (B, A), dtype=jnp.float32)
    std = jax.random.uniform(k4, (B, A), minval=0.5, maxval=1.5,
                             dtype=jnp.float32)                # strictly positive

    loss = jax.block_until_ready(
        gaussian_bc_loss(x, action, mean, std, min_kernel_elements=0))
    ref = _reference(action, mean, std)
    assert jnp.allclose(loss, ref, rtol=1e-5, atol=1e-5), (loss, ref)

    # Extra coverage: tiny-shape jnp fallback, multi-tile lane-dense path,
    # ragged (masked) single- and multi-tile paths, and bf16 in-kernel upcast.
    _check((8, 32), seed=1)                                      # jnp fallback
    _check((8192, 256), seed=2, rtol=1e-4)                       # 2 lane-dense tiles
    _check((1037, 20), seed=3, force_kernel=True)                # ragged, masked
    _check((9000, 300), seed=4, rtol=1e-4)                       # ragged, multi-tile
    _check((4096, 128), dtype=jnp.bfloat16, seed=5, rtol=1e-4)   # bf16 inputs

    print("KERNEL_OK")
</pallas_src>

<mosaic_0001>
module attributes {stable_mosaic.version = 11 : i64} {
  func.func @_gaussian_bc_tile_kernel(%arg0: i32, %arg1: memref<16x128xf32, #tpu.memory_space<vmem>>, %arg2: memref<16x128xf32, #tpu.memory_space<vmem>>, %arg3: memref<16x128xf32, #tpu.memory_space<vmem>>, %arg4: memref<1x8x128xf32, #tpu.memory_space<vmem>>) attributes {dimension_semantics = [#tpu.dimension_semantics<parallel>], iteration_bounds = array<i64: 1>, scalar_prefetch = 0 : i64, scratch_operands = 0 : i64, tpu.core_type = #tpu.core_type<tc>, window_params = [{transform_indices = @transform_0, window_bounds = array<i64: 16, 128>}, {transform_indices = @transform_1, window_bounds = array<i64: 16, 128>}, {transform_indices = @transform_2, window_bounds = array<i64: 16, 128>}, {transform_indices = @transform_3, window_bounds = array<i64: 1, 8, 128>}]} {
    %cst = arith.constant 0.000000e+00 : f32
    %0 = vector.broadcast %cst : f32 to vector<8x128xf32>
    %c0_i32 = arith.constant 0 : i32
    %c16_i32 = arith.constant 16 : i32
    %1 = arith.muli %c0_i32, %c16_i32 : i32
    %2 = tpu.assume_multiple %1, 16 : i32
    %3 = arith.index_cast %2 : i32 to index
    %c0 = arith.constant 0 : index
    %4 = vector.load %arg1[%3, %c0] : memref<16x128xf32, #tpu.memory_space<vmem>>, vector<16x128xf32>
    %5 = arith.index_cast %2 : i32 to index
    %c0_0 = arith.constant 0 : index
    %6 = vector.load %arg2[%5, %c0_0] : memref<16x128xf32, #tpu.memory_space<vmem>>, vector<16x128xf32>
    %7 = arith.index_cast %2 : i32 to index
    %c0_1 = arith.constant 0 : index
    %8 = vector.load %arg3[%7, %c0_1] : memref<16x128xf32, #tpu.memory_space<vmem>>, vector<16x128xf32>
    %9 = arith.subf %4, %6 : vector<16x128xf32>
    %10 = arith.mulf %8, %8 : vector<16x128xf32>
    %11 = arith.mulf %9, %9 : vector<16x128xf32>
    %12 = arith.divf %11, %10 : vector<16x128xf32>
    %13 = math.log %10 : vector<16x128xf32>
    %14 = arith.addf %12, %13 : vector<16x128xf32>
    %cst_2 = arith.constant 2.28945971 : f32
    %15 = vector.broadcast %cst_2 : f32 to vector<16x128xf32>
    %16 = arith.addf %14, %15 : vector<16x128xf32>
    %17 = vector.shape_cast %16 : vector<16x128xf32> to vector<2x8x128xf32>
    %cst_3 = arith.constant dense<0.000000e+00> : vector<8x128xf32>
    %18 = vector.multi_reduction <add>, %17, %cst_3 [0] : vector<2x8x128xf32> to vector<8x128xf32>
    %19 = arith.addf %0, %18 : vector<8x128xf32>
    %c1_i32 = arith.constant 1 : i32
    %c0_4 = arith.constant 0 : index
    %c0_5 = arith.constant 0 : index
    %c0_6 = arith.constant 0 : index
    %20 = vector.load %arg4[%c0_4, %c0_5, %c0_6] : memref<1x8x128xf32, #tpu.memory_space<vmem>>, vector<1x8x128xf32>
    %21 = vector.shape_cast %20 : vector<1x8x128xf32> to vector<8x128xf32>
    %22 = vector.shape_cast %19 : vector<8x128xf32> to vector<1x8x128xf32>
    tpu.vector_store %arg4[%c0_4, %c0_5, %c0_6], %22 {strides = array<i32>} : memref<1x8x128xf32, #tpu.memory_space<vmem>>, vector<1x8x128xf32>,
    return
  }
  func.func @transform_0(%arg0: i32) -> (i32, i32) {
    %c0_i32 = arith.constant 0 : i32
    %c0_i32_0 = arith.constant 0 : i32
    return %arg0, %c0_i32 : i32, i32
  }
  func.func @transform_1(%arg0: i32) -> (i32, i32) {
    %c0_i32 = arith.constant 0 : i32
    %c0_i32_0 = arith.constant 0 : i32
    return %arg0, %c0_i32 : i32, i32
  }
  func.func @transform_2(%arg0: i32) -> (i32, i32) {
    %c0_i32 = arith.constant 0 : i32
    %c0_i32_0 = arith.constant 0 : i32
    return %arg0, %c0_i32 : i32, i32
  }
  func.func @transform_3(%arg0: i32) -> (i32, i32, i32) {
    %c0_i32 = arith.constant 0 : i32
    %c0_i32_0 = arith.constant 0 : i32
    %c0_i32_1 = arith.constant 0 : i32
    return %arg0, %c0_i32, %c0_i32_0 : i32, i32, i32
  }
}

</mosaic_0001>

<llo_original>
// kernel: tpu_custom_call.1
$region0: #{tpu_custom_call.1}
  #allocation0 [shape = 'u32[]', space=smem, size = 0x4, offset = 0x4, fixed_abs, tag = 'smem constant byte address 0x4 - core index']
  #allocation1 [shape = 'u32[144,128]{1,0:T(1,128)}', space=vmem, size = 0x12000, scoped, tag = 'internal scratch']
  %s0 = inlined_call_operand.hbm [shape: f32[16,128], index: 0, kind: input, shape index: {}]
  %s1 = inlined_call_operand.hbm [shape: f32[16,128], index: 1, kind: input, shape index: {}]
  %s2 = inlined_call_operand.hbm [shape: f32[16,128], index: 2, kind: input, shape index: {}]
  %s3 = inlined_call_operand.hbm [shape: f32[1,8,128], index: 3, kind: output, shape index: {}]
  %s4 = sld [smem:[#allocation0]]
  $region34: #{tpu_custom_call.1} parent=0
    _
  %s6 = ssub.s32 1, %s4
  %s7 = scalar_select 0, %s6, %s4
  $region1: #{tpu_custom_call.1} parent=0
    #allocation2 [shape = 'u8[8192]{0}', space=vmem, size = 0x2000, scoped, tag = 'input window, operand 0, single buffered']
    #allocation3 [shape = 's32[1]{0}', space=sflag, size = 0x4, scoped, tag = 'scoped memory for tpu_custom_call.1']
    #allocation4 [shape = 's32[1]{0}', space=sflag, size = 0x4, scoped, tag = 'scoped memory for tpu_custom_call.1']
    #allocation5 [shape = 'u8[8192]{0}', space=vmem, size = 0x2000, scoped, tag = 'input window, operand 1, single buffered']
    #allocation6 [shape = 's32[1]{0}', space=sflag, size = 0x4, scoped, tag = 'scoped memory for tpu_custom_call.1']
    #allocation7 [shape = 'u8[8192]{0}', space=vmem, size = 0x2000, scoped, tag = 'input window, operand 2, single buffered']
    #allocation8 [shape = 'u8[4096]{0}', space=vmem, size = 0x1000, scoped, tag = 'output window, operand 0, single buffered']
    %8 = vsyncpa [#allocation3], 0
    %9 = vsyncpa [#allocation6], 0
    %10 = vsyncpa [#allocation4], 0
    // Predicated region
    $region2: #{tpu_custom_call.1} parent=1 // pred_check
      _
    $region3: #{tpu_custom_call.1} parent=1 // pred_check_branch
      %12 = sbr.rel (0) target = $region5
    $region4: #{tpu_custom_call.1} parent=1 // pred_region
      %s14 = ssub.s32 256, 256
      %15 = vsyncadd [#allocation3], %s14
      %s16 = sshll.u32 [#allocation2], 4
      %s17 = int_to_ptr.vmem [resolvable:$true] %s16
      %22 = dma.hbm_to_vmem [thread:$0]  %s0, 256, %s17, [#allocation3], 128, 128, 8
    $region5: #{tpu_custom_call.1} parent=1 // pred_fallthru
      _
    // Predicated region
    $region6: #{tpu_custom_call.1} parent=1 // pred_check
      _
    $region7: #{tpu_custom_call.1} parent=1 // pred_check_branch
      %24 = sbr.rel (0) target = $region9
    $region8: #{tpu_custom_call.1} parent=1 // pred_region
      %s26 = ssub.s32 256, 256
      %27 = vsyncadd [#allocation6], %s26
      %s28 = sshll.u32 [#allocation5], 4
      %s29 = int_to_ptr.vmem [resolvable:$true] %s28
      %34 = dma.hbm_to_vmem [thread:$0]  %s1, 256, %s29, [#allocation6], 128, 128, 8
    $region9: #{tpu_custom_call.1} parent=1 // pred_fallthru
      _
    // Predicated region
    $region10: #{tpu_custom_call.1} parent=1 // pred_check
      _
    $region11: #{tpu_custom_call.1} parent=1 // pred_check_branch
      %36 = sbr.rel (0) target = $region13
    $region12: #{tpu_custom_call.1} parent=1 // pred_region
      %s38 = ssub.s32 256, 256
      %39 = vsyncadd [#allocation6], %s38
      %s40 = sshll.u32 [#allocation7], 4
      %s41 = int_to_ptr.vmem [resolvable:$true] %s40
      %46 = dma.hbm_to_vmem [thread:$0]  %s2, 256, %s41, [#allocation6], 128, 128, 8
    $region13: #{tpu_custom_call.1} parent=1 // pred_fallthru
      _
    // Predicated region
    $region14: #{tpu_custom_call.1} parent=1 // pred_check
      _
    $region15: #{tpu_custom_call.1} parent=1 // pred_check_branch
      %48 = sbr.rel (0) target = $region17
    $region16: #{tpu_custom_call.1} parent=1 // pred_region
      %49 = dma.done [#allocation3], 256
    $region17: #{tpu_custom_call.1} parent=1 // pred_fallthru
      _
    // Predicated region
    $region18: #{tpu_custom_call.1} parent=1 // pred_check
      _
    $region19: #{tpu_custom_call.1} parent=1 // pred_check_branch
      %51 = sbr.rel (0) target = $region21
    $region20: #{tpu_custom_call.1} parent=1 // pred_region
      %52 = dma.done [#allocation6], 256
    $region21: #{tpu_custom_call.1} parent=1 // pred_fallthru
      _
    // Predicated region
    $region22: #{tpu_custom_call.1} parent=1 // pred_check
      _
    $region23: #{tpu_custom_call.1} parent=1 // pred_check_branch
      %54 = sbr.rel (0) target = $region25
    $region24: #{tpu_custom_call.1} parent=1 // pred_region
      %55 = dma.done [#allocation6], 256
    $region25: #{tpu_custom_call.1} parent=1 // pred_fallthru
      _
    %v56 = vld [vmem:[#allocation2] sm:$0xff]
    %v57 = vld [vmem:[#allocation2 + $0x8] sm:$0xff]
    %v58 = vld [vmem:[#allocation5] sm:$0xff]
    %v59 = vld [vmem:[#allocation5 + $0x8] sm:$0xff]
    %v60 = vld [vmem:[#allocation7] sm:$0xff]
    %v61 = vld [vmem:[#allocation7 + $0x8] sm:$0xff]
    %v62 = vsub.f32 %v56, %v58
    %v63 = vsub.f32 %v57, %v59
    %v64 = vmul.f32 %v60, %v60
    %v65 = vmul.f32 %v61, %v61
    %v66 = vmul.f32 %v62, %v62
    %v67 = vmul.f32 %v63, %v63
    %v68 = vrcp.pop %v64
    %v69 = vmul.f32 %v66, %v68
    %v70 = vrcp.pop %v65
    %v71 = vmul.f32 %v67, %v70
    %v72 = vlog2.pop %v64
    %v73 = vmul.f32 %v72, 0.6931472
    %v74 = vlog2.pop %v65
    %v75 = vmul.f32 %v74, 0.6931472
    %v76 = vadd.f32 %v69, %v73
    %v77 = vadd.f32 %v71, %v75
    %v78 = vadd.f32 %v76, 2.2894597
    %v79 = vadd.f32 %v77, 2.2894597
    %v80 = vadd.f32 %v78, %v79
    %v81 = vadd.f32 %v80, 0.0
    %82 = vst [vmem:[#allocation8] sm:$0xff] %v81
    // Predicated region
    $region26: #{tpu_custom_call.1} parent=1 // pred_check
      _
    $region27: #{tpu_custom_call.1} parent=1 // pred_check_branch
      %84 = sbr.rel (0) target = $region29
    $region28: #{tpu_custom_call.1} parent=1 // pred_region
      %s86 = ssub.s32 128, 128
      %87 = vsyncadd [#allocation4], %s86
      %s89 = sshll.u32 [#allocation8], 4
      %s90 = int_to_ptr.vmem [resolvable:$true] %s89
      %92 = dma.vmem_to_hbm [thread:$0]  %s90, 128, %s3, [#allocation4]
    $region29: #{tpu_custom_call.1} parent=1 // pred_fallthru
      _
    // Predicated region
    $region30: #{tpu_custom_call.1} parent=1 // pred_check
      _
    $region31: #{tpu_custom_call.1} parent=1 // pred_check_branch
      %94 = sbr.rel (0) target = $region33
    $region32: #{tpu_custom_call.1} parent=1 // pred_region
      %95 = dma.done [#allocation4], 128
    $region33: #{tpu_custom_call.1} parent=1 // pred_fallthru
      _
    %96 = vsyncpa [#allocation3], 1
    %97 = vsyncpa [#allocation6], 1
    %98 = vsyncpa [#allocation4], 1

</llo_original>
